<compile_context>
chip_gen: v6e
topology: v6e:2x2x1
jax: 0.10.0
libtpu: 0.0.40
codegen_flags: <defaults>
</compile_context>

<pallas_src>
import functools

import jax
import jax.numpy as jnp
from jax.experimental import pallas as pl
from jax.experimental.pallas import tpu as pltpu


_LANES = 128
_SUBLANES = 8
# ~2 MiB per input tile buffer (f32-equivalent). 2 inputs x 2 pipeline buffers
# -> ~8 MiB VMEM + a tiny (8,D) accumulator: under v5e's 16 MiB scoped default
# and well under v7x's 64 MiB physical VMEM (do NOT size for 128 MiB).
_TILE_BYTES_TARGET = 2 << 20


def _cdiv(a, b):
    return -(-a // b)


def _round_up(a, b):
    return _cdiv(a, b) * b


def _tensorcores_per_chip():
    """Best-effort TensorCore count: 2 on v7x, 1 on v5e/v6e."""
    try:
        kind = jax.devices()[0].device_kind.lower()
        if "v7" in kind:
            return 2
    except Exception:
        pass
    return 1


def _bce_kernel(x_ref, t_ref, o_ref, acc_ref, *, rows, block_rows,
                tiles_per_part, needs_mask, binary_targets):
    """Grid = (partial, tile). Streams (block_rows, D) tiles, folds each tile
    into a small (8, D) VMEM accumulator, one cross-lane reduce at finalize."""
    t_idx = pl.program_id(1)

    @pl.when(t_idx == 0)
    def _():
        acc_ref[...] = jnp.zeros_like(acc_ref)

    # Native-dtype streaming; upcast for the transcendental math.
    x = x_ref[...].astype(jnp.float32)
    t = t_ref[...].astype(jnp.float32)

    if binary_targets:
        # Fast path (one EUP log per element) — only valid for 0/1 targets.
        p = jnp.where(t > 0.5, x, 1.0 - x)
        s = jnp.maximum(jnp.log(p), -100.0)
    else:
        # PyTorch BCELoss clamps each log term at -100.
        log_x = jnp.maximum(jnp.log(x), -100.0)
        log_1mx = jnp.maximum(jnp.log(1.0 - x), -100.0)
        # BCE = -(t*log_x + (1-t)*log_1mx) = -(log_1mx + t*(log_x - log_1mx)).
        # Accumulate the un-negated form; the minus sign is folded into the
        # wrapper's final 1/N scale (saves VALU ops per vreg).
        s = log_1mx + t * (log_x - log_1mx)

    if needs_mask:
        # Ragged tail / duplicated-last-block steps: zero out rows >= `rows`.
        # (jnp.where selects, so NaN/Inf from garbage lanes never propagate.)
        start = (pl.program_id(0) * tiles_per_part + t_idx) * block_rows
        row = jax.lax.broadcasted_iota(jnp.int32, s.shape, 0)
        s = jnp.where(start + row < rows, s, 0.0)

    if block_rows % _SUBLANES == 0 and block_rows > _SUBLANES:
        # Fold sublane-groups with pure VPU adds into the small accumulator.
        acc_ref[...] += jnp.sum(
            s.reshape(block_rows // _SUBLANES, _SUBLANES, s.shape[-1]), axis=0)
    else:
        acc_ref[...] += s

    @pl.when(t_idx == pl.num_programs(1) - 1)
    def _():
        # One tiny XLU reduce per partial, single scalar SMEM write.
        o_ref[0, 0] = jnp.sum(acc_ref[...])


def bce_loss_pallas(input_scale, target_scale, *, assume_binary_targets=False):
    """input_scale/target_scale: (B, ...) probabilities & targets."""
    shape = input_scale.shape
    assert target_scale.shape == shape, (shape, target_scale.shape)
    B = shape[0]
    total = 1
    for d in shape:
        total *= d
    n_per_item = total // B

    # Choose a 2-D view that is a FREE row-major reshape (no copy, no pad):
    if total % _LANES == 0:
        R, D = total // _LANES, _LANES          # fully lane-dense
    else:
        D = shape[-1]                           # keep native trailing dim;
        R = total // D                          # ragged last block is masked.

    x2 = input_scale.reshape(R, D)              # free bitcast, native dtype
    t2 = target_scale.reshape(R, D)

    lanes_padded = _round_up(D, _LANES)
    max_tr = max(_SUBLANES,
                 (_TILE_BYTES_TARGET // (lanes_padded * 4))
                 // _SUBLANES * _SUBLANES)

    if R < _SUBLANES:
        block_rows = R                          # block == full array dims
        num_blocks = 1
    else:
        nb = _cdiv(R, max_tr)                   # minimal #row-blocks at the cap
        block_rows = min(_round_up(_cdiv(R, nb), _SUBLANES),   # balanced tiles
                         max_tr,
                         (R // _SUBLANES) * _SUBLANES)
        num_blocks = _cdiv(R, block_rows)

    num_partials = max(1, min(_tensorcores_per_chip(), num_blocks))
    tiles_per_part = _cdiv(num_blocks, num_partials)
    # Static: any garbage rows to mask (partial last block / duplicated block)?
    needs_mask = num_partials * tiles_per_part * block_rows > R

    acc_rows = _SUBLANES if block_rows % _SUBLANES == 0 else block_rows

    def in_map(c, t):
        # Clamp so duplicated trailing steps never request a fully-OOB block;
        # their contribution is zeroed by the in-kernel mask.
        return (jnp.minimum(c * tiles_per_part + t, num_blocks - 1), 0)

    kernel = functools.partial(
        _bce_kernel, rows=R, block_rows=block_rows,
        tiles_per_part=tiles_per_part, needs_mask=needs_mask,
        binary_targets=assume_binary_targets)

    cost = pl.CostEstimate(
        flops=9 * total,
        transcendentals=(1 if assume_binary_targets else 2) * total,
        bytes_accessed=total * (x2.dtype.itemsize + t2.dtype.itemsize)
                       + num_partials * 4)

    partials = pl.pallas_call(
        kernel,
        out_shape=jax.ShapeDtypeStruct((num_partials, 1), jnp.float32),
        grid_spec=pltpu.PrefetchScalarGridSpec(
            num_scalar_prefetch=0,
            grid=(num_partials, tiles_per_part),
            in_specs=[
                pl.BlockSpec((block_rows, D), in_map),
                pl.BlockSpec((block_rows, D), in_map),
            ],
            out_specs=pl.BlockSpec((1, 1), lambda c, t: (c, 0),
                                   memory_space=pltpu.SMEM),
            scratch_shapes=[pltpu.VMEM((acc_rows, D), jnp.float32)],
        ),
        compiler_params=pltpu.CompilerParams(
            # Leading axis shards the partials across v7x's two TensorCores.
            # TODO(synk): if xprof shows only one TC busy on v7x, switch this
            # axis to pltpu.CORE_PARALLEL.
            dimension_semantics=("parallel", "arbitrary"),
        ),
        cost_estimate=cost,
    )(x2, t2)

    # sum_b mean_b == (global elementwise sum) / (elements per item); the BCE
    # minus sign is folded in here (kernel accumulates the un-negated form).
    return jnp.sum(partials) * (-1.0 / float(n_per_item))


def bce_loss_ref(input_scale, target_scale):
    """Pure-JAX reference matching the PyTorch module (per-item mean, summed)."""
    x = input_scale.astype(jnp.float32)
    t = target_scale.astype(jnp.float32)
    log_x = jnp.maximum(jnp.log(x), -100.0)
    log_1mx = jnp.maximum(jnp.log(1.0 - x), -100.0)
    loss = -(t * log_x + (1.0 - t) * log_1mx)
    per_item_mean = jnp.mean(loss.reshape(loss.shape[0], -1), axis=1)
    return jnp.sum(per_item_mean)


if __name__ == "__main__":
    key = jax.random.PRNGKey(0)
    k1, k2, k3, k4 = jax.random.split(key, 4)

    # Test 1: lane-dense aligned case (total % 128 == 0, no masking path).
    B, C, H, W = 2, 4, 16, 16
    x1 = jax.nn.sigmoid(jax.random.normal(k1, (B, C, H, W), jnp.float32))
    t1 = (jax.random.uniform(k2, (B, C, H, W)) > 0.5).astype(jnp.float32)
    out1 = jax.block_until_ready(bce_loss_pallas(x1, t1))
    ref1 = bce_loss_ref(x1, t1)
    assert jnp.allclose(out1, ref1, rtol=1e-5, atol=1e-5), (out1, ref1)

    # Test 1b: native bf16 streaming (upcast happens inside the kernel).
    x1b = x1.astype(jnp.bfloat16)
    out1b = jax.block_until_ready(bce_loss_pallas(x1b, t1))
    ref1b = bce_loss_ref(x1b, t1)
    assert jnp.allclose(out1b, ref1b, rtol=1e-5, atol=1e-5), (out1b, ref1b)

    # Test 1c: binary-target single-log fast path (targets are 0/1 here).
    out1c = jax.block_until_ready(
        bce_loss_pallas(x1, t1, assume_binary_targets=True))
    assert jnp.allclose(out1c, ref1, rtol=1e-5, atol=1e-5), (out1c, ref1)

    # Test 2: ragged shapes (total % 128 != 0) -> in-kernel masked partial
    # last block, no padding / concatenate copies.
    B2, C2, H2, W2 = 2, 3, 7, 10
    x2 = jax.nn.sigmoid(jax.random.normal(k3, (B2, C2, H2, W2), jnp.float32))
    t2 = (jax.random.uniform(k4, (B2, C2, H2, W2)) > 0.5).astype(jnp.float32)
    out2 = jax.block_until_ready(bce_loss_pallas(x2, t2))
    ref2 = bce_loss_ref(x2, t2)
    assert jnp.allclose(out2, ref2, rtol=1e-5, atol=1e-5), (out2, ref2)

    print("KERNEL_OK")
</pallas_src>

<mosaic_0001>
module attributes {stable_mosaic.version = 11 : i64} {
  func.func @_bce_kernel(%arg0: i32, %arg1: i32, %arg2: memref<16x128xf32, #tpu.memory_space<vmem>>, %arg3: memref<16x128xf32, #tpu.memory_space<vmem>>, %arg4: memref<1x1xf32, #tpu.memory_space<smem>>, %arg5: memref<8x128xf32, #tpu.memory_space<vmem>>) attributes {dimension_semantics = [#tpu.dimension_semantics<parallel>, #tpu.dimension_semantics<arbitrary>], iteration_bounds = array<i64: 1, 1>, scalar_prefetch = 0 : i64, scratch_operands = 1 : i64, tpu.core_type = #tpu.core_type<tc>, window_params = [{transform_indices = @transform_0, window_bounds = array<i64: 16, 128>}, {transform_indices = @transform_1, window_bounds = array<i64: 16, 128>}, {transform_indices = @transform_2, window_bounds = array<i64: 1, 1>}]} {
    %c0_i32 = arith.constant 0 : i32
    %0 = arith.cmpi eq, %arg1, %c0_i32 : i32
    %1 = arith.extui %0 : i1 to i32
    %c0_i32_0 = arith.constant 0 : i32
    %2 = arith.cmpi ne, %1, %c0_i32_0 : i32
    scf.if %2 {
      %cst_13 = arith.constant 0.000000e+00 : f32
      %24 = vector.broadcast %cst_13 : f32 to vector<8x128xf32>
      %c0_14 = arith.constant 0 : index
      %c0_15 = arith.constant 0 : index
      %25 = vector.load %arg5[%c0_14, %c0_15] : memref<8x128xf32, #tpu.memory_space<vmem>>, vector<8x128xf32>
      tpu.vector_store %arg5[%c0_14, %c0_15], %24 {strides = array<i32>} : memref<8x128xf32, #tpu.memory_space<vmem>>, vector<8x128xf32>,
    } else {
    }
    %c0 = arith.constant 0 : index
    %c0_1 = arith.constant 0 : index
    %3 = vector.load %arg2[%c0, %c0_1] : memref<16x128xf32, #tpu.memory_space<vmem>>, vector<16x128xf32>
    %c0_2 = arith.constant 0 : index
    %c0_3 = arith.constant 0 : index
    %4 = vector.load %arg3[%c0_2, %c0_3] : memref<16x128xf32, #tpu.memory_space<vmem>>, vector<16x128xf32>
    %5 = math.log %3 : vector<16x128xf32>
    %cst = arith.constant -1.000000e+02 : f32
    %6 = vector.broadcast %cst : f32 to vector<16x128xf32>
    %7 = arith.maximumf %5, %6 : vector<16x128xf32>
    %cst_4 = arith.constant 1.000000e+00 : f32
    %8 = vector.broadcast %cst_4 : f32 to vector<16x128xf32>
    %9 = arith.subf %8, %3 : vector<16x128xf32>
    %10 = math.log %9 : vector<16x128xf32>
    %cst_5 = arith.constant -1.000000e+02 : f32
    %11 = vector.broadcast %cst_5 : f32 to vector<16x128xf32>
    %12 = arith.maximumf %10, %11 : vector<16x128xf32>
    %13 = arith.subf %7, %12 : vector<16x128xf32>
    %14 = arith.mulf %4, %13 : vector<16x128xf32>
    %15 = arith.addf %12, %14 : vector<16x128xf32>
    %c0_6 = arith.constant 0 : index
    %c0_7 = arith.constant 0 : index
    %16 = vector.load %arg5[%c0_6, %c0_7] : memref<8x128xf32, #tpu.memory_space<vmem>>, vector<8x128xf32>
    %17 = vector.shape_cast %15 : vector<16x128xf32> to vector<2x8x128xf32>
    %cst_8 = arith.constant dense<0.000000e+00> : vector<8x128xf32>
    %18 = vector.multi_reduction <add>, %17, %cst_8 [0] : vector<2x8x128xf32> to vector<8x128xf32>
    %19 = arith.addf %16, %18 : vector<8x128xf32>
    %c0_9 = arith.constant 0 : index
    %c0_10 = arith.constant 0 : index
    %20 = vector.load %arg5[%c0_9, %c0_10] : memref<8x128xf32, #tpu.memory_space<vmem>>, vector<8x128xf32>
    tpu.vector_store %arg5[%c0_9, %c0_10], %19 {strides = array<i32>} : memref<8x128xf32, #tpu.memory_space<vmem>>, vector<8x128xf32>,
    %c0_i32_11 = arith.constant 0 : i32
    %21 = arith.cmpi eq, %arg1, %c0_i32_11 : i32
    %22 = arith.extui %21 : i1 to i32
    %c0_i32_12 = arith.constant 0 : i32
    %23 = arith.cmpi ne, %22, %c0_i32_12 : i32
    scf.if %23 {
      %c0_13 = arith.constant 0 : index
      %c0_14 = arith.constant 0 : index
      %24 = vector.load %arg5[%c0_13, %c0_14] : memref<8x128xf32, #tpu.memory_space<vmem>>, vector<8x128xf32>
      %25 = vector.shape_cast %24 : vector<8x128xf32> to vector<1x8x128xf32>
      %cst_15 = arith.constant dense<0.000000e+00> : vector<1xf32>
      %26 = vector.multi_reduction <add>, %25, %cst_15 [1, 2] : vector<1x8x128xf32> to vector<1xf32>
      %27 = vector.shape_cast %26 : vector<1xf32> to vector<1x1x1xf32>
      %28 = vector.extract %27[0, 0, 0] : f32 from vector<1x1x1xf32>
      %c0_16 = arith.constant 0 : index
      %c0_17 = arith.constant 0 : index
      %29 = memref.load %arg4[%c0_16, %c0_17] : memref<1x1xf32, #tpu.memory_space<smem>>
      memref.store %28, %arg4[%c0_16, %c0_17] : memref<1x1xf32, #tpu.memory_space<smem>>
    } else {
    }
    return
  }
  func.func @transform_0(%arg0: i32, %arg1: i32) -> (i32, i32) {
    %c1_i32 = arith.constant 1 : i32
    %0 = arith.muli %arg0, %c1_i32 : i32
    %1 = arith.addi %0, %arg1 : i32
    %c0_i32 = arith.constant 0 : i32
    %2 = arith.minsi %1, %c0_i32 : i32
    %c0_i32_0 = arith.constant 0 : i32
    %c0_i32_1 = arith.constant 0 : i32
    return %2, %c0_i32_0 : i32, i32
  }
  func.func @transform_1(%arg0: i32, %arg1: i32) -> (i32, i32) {
    %c1_i32 = arith.constant 1 : i32
    %0 = arith.muli %arg0, %c1_i32 : i32
    %1 = arith.addi %0, %arg1 : i32
    %c0_i32 = arith.constant 0 : i32
    %2 = arith.minsi %1, %c0_i32 : i32
    %c0_i32_0 = arith.constant 0 : i32
    %c0_i32_1 = arith.constant 0 : i32
    return %2, %c0_i32_0 : i32, i32
  }
  func.func @transform_2(%arg0: i32, %arg1: i32) -> (i32, i32) {
    %c0_i32 = arith.constant 0 : i32
    %c0_i32_0 = arith.constant 0 : i32
    return %arg0, %c0_i32 : i32, i32
  }
}

</mosaic_0001>

<llo_original>
// kernel: tpu_custom_call.1
$region0: #{tpu_custom_call.1}
  #allocation0 [shape = 'u32[]', space=smem, size = 0x4, offset = 0x4, fixed_abs, tag = 'smem constant byte address 0x4 - core index']
  #allocation1 [shape = 'u32[144,128]{1,0:T(1,128)}', space=vmem, size = 0x12000, scoped, tag = 'internal scratch']
  #allocation2 [shape = 'f32[8,128]{1,0:T(8,128)}', space=vmem, size = 0x1000, scoped, tag = 'scratch operand']
  %s0 = inlined_call_operand.hbm [shape: f32[16,128], index: 0, kind: input, shape index: {}]
  %s1 = inlined_call_operand.hbm [shape: f32[16,128], index: 1, kind: input, shape index: {}]
  %s2 = inlined_call_operand.hbm [shape: f32[1,1], index: 2, kind: output, shape index: {}]
  %s3 = sld [smem:[#allocation0]]
  $region34: #{tpu_custom_call.1} parent=0
    _
  %s5 = ssub.s32 1, %s3
  %s6 = scalar_select 0, %s5, %s3
  $region1: #{tpu_custom_call.1} parent=0
    #allocation3 [shape = 'u8[8192]{0}', space=vmem, size = 0x2000, scoped, tag = 'input window, operand 0, single buffered']
    #allocation4 [shape = 's32[1]{0}', space=sflag, size = 0x4, scoped, tag = 'scoped memory for tpu_custom_call.1']
    #allocation5 [shape = 's32[1]{0}', space=sflag, size = 0x4, scoped, tag = 'scoped memory for tpu_custom_call.1']
    #allocation6 [shape = 'u8[8192]{0}', space=vmem, size = 0x2000, scoped, tag = 'input window, operand 1, single buffered']
    #allocation7 [shape = 's32[1]{0}', space=sflag, size = 0x4, scoped, tag = 'scoped memory for tpu_custom_call.1']
    #allocation8 [shape = 'u8[512]{0}', space=smem, size = 0x200, scoped, tag = 'output window, operand 0, single buffered']
    %7 = vsyncpa [#allocation4], 0
    %8 = vsyncpa [#allocation7], 0
    %9 = vsyncpa [#allocation5], 0
    // Predicated region
    $region2: #{tpu_custom_call.1} parent=1 // pred_check
      _
    $region3: #{tpu_custom_call.1} parent=1 // pred_check_branch
      %11 = sbr.rel (0) target = $region5
    $region4: #{tpu_custom_call.1} parent=1 // pred_region
      %s12 = sadd.s32 0, 0
      %p13 = scmp.lt.s32.totalorder %s12, 0
      %s14 = scalar_select %p13, %s12, 0
      %s15 = smul.u32 2, %s14
      %s17 = ssub.s32 256, 256
      %18 = vsyncadd [#allocation4], %s17
      %s19 = smul.addr %s15, 128
      %s20 = scalar_lea.hbm %s0, %s19
      %s21 = sshll.u32 [#allocation3], 4
      %s22 = int_to_ptr.vmem [resolvable:$true] %s21
      %27 = dma.hbm_to_vmem [thread:$0]  %s20, 256, %s22, [#allocation4], 128, 128, 8
    $region5: #{tpu_custom_call.1} parent=1 // pred_fallthru
      _
    // Predicated region
    $region6: #{tpu_custom_call.1} parent=1 // pred_check
      _
    $region7: #{tpu_custom_call.1} parent=1 // pred_check_branch
      %29 = sbr.rel (0) target = $region9
    $region8: #{tpu_custom_call.1} parent=1 // pred_region
      %s30 = sadd.s32 0, 0
      %p31 = scmp.lt.s32.totalorder %s30, 0
      %s32 = scalar_select %p31, %s30, 0
      %s33 = smul.u32 2, %s32
      %s35 = ssub.s32 256, 256
      %36 = vsyncadd [#allocation7], %s35
      %s37 = smul.addr %s33, 128
      %s38 = scalar_lea.hbm %s1, %s37
      %s39 = sshll.u32 [#allocation6], 4
      %s40 = int_to_ptr.vmem [resolvable:$true] %s39
      %45 = dma.hbm_to_vmem [thread:$0]  %s38, 256, %s40, [#allocation7], 128, 128, 8
    $region9: #{tpu_custom_call.1} parent=1 // pred_fallthru
      _
    // Predicated region
    $region10: #{tpu_custom_call.1} parent=1 // pred_check
      _
    $region11: #{tpu_custom_call.1} parent=1 // pred_check_branch
      %47 = sbr.rel (0) target = $region13
    $region12: #{tpu_custom_call.1} parent=1 // pred_region
      %48 = dma.done [#allocation4], 256
    $region13: #{tpu_custom_call.1} parent=1 // pred_fallthru
      _
    // Predicated region
    $region14: #{tpu_custom_call.1} parent=1 // pred_check
      _
    $region15: #{tpu_custom_call.1} parent=1 // pred_check_branch
      %50 = sbr.rel (0) target = $region17
    $region16: #{tpu_custom_call.1} parent=1 // pred_region
      %51 = dma.done [#allocation7], 256
    $region17: #{tpu_custom_call.1} parent=1 // pred_fallthru
      _
    %s52 = sadd.s32 0, 0
    %p53 = scmp.lt.s32.totalorder %s52, 0
    %s54 = scalar_select %p53, %s52, 0
    %s55 = smul.u32 2, %s54
    %s56 = sadd.s32 0, 0
    %p57 = scmp.lt.s32.totalorder %s56, 0
    %s58 = scalar_select %p57, %s56, 0
    %s59 = smul.u32 2, %s58
    %p60 = scmp.eq.s32.totalorder 0, 0
    // Predicated region
    $region18: #{tpu_custom_call.1} parent=1 // pred_check
      %p61 = pneg %p60
    $region19: #{tpu_custom_call.1} parent=1 // pred_check_branch
      %63 = sbr.rel (%p61) target = $region21
    $region20: #{tpu_custom_call.1} parent=1 // pred_region
      %64 = vst [vmem:[#allocation2] sm:$0xff] 0.0
    $region21: #{tpu_custom_call.1} parent=1 // pred_fallthru
      _
    %v65 = vld [vmem:[#allocation3] sm:$0xff]
    %v66 = vld [vmem:[#allocation3 + $0x8] sm:$0xff]
    %v67 = vld [vmem:[#allocation6] sm:$0xff]
    %v68 = vld [vmem:[#allocation6 + $0x8] sm:$0xff]
    %v69 = vlog2.pop %v65
    %v70 = vmul.f32 %v69, 0.6931472
    %v71 = vlog2.pop %v66
    %v72 = vmul.f32 %v71, 0.6931472
    %v73 = vmax.f32 %v70, -100.0
    %v74 = vmax.f32 %v72, -100.0
    %v75 = vsub.f32 1.0, %v65
    %v76 = vsub.f32 1.0, %v66
    %v77 = vlog2.pop %v75
    %v78 = vmul.f32 %v77, 0.6931472
    %v79 = vlog2.pop %v76
    %v80 = vmul.f32 %v79, 0.6931472
    %v81 = vmax.f32 %v78, -100.0
    %v82 = vmax.f32 %v80, -100.0
    %v83 = vsub.f32 %v73, %v81
    %v84 = vsub.f32 %v74, %v82
    %v85 = vmul.f32 %v67, %v83
    %v86 = vmul.f32 %v68, %v84
    %v87 = vadd.f32 %v81, %v85
    %v88 = vadd.f32 %v82, %v86
    %v89 = vld [vmem:[#allocation2] sm:$0xff]
    %v90 = vadd.f32 %v87, %v88
    %v91 = vadd.f32 %v89, %v90
    %92 = vst [vmem:[#allocation2] sm:$0xff] %v91
    // Predicated region
    $region22: #{tpu_custom_call.1} parent=1 // pred_check
      %p93 = pneg %p60
    $region23: #{tpu_custom_call.1} parent=1 // pred_check_branch
      %95 = sbr.rel (%p93) target = $region25
    $region24: #{tpu_custom_call.1} parent=1 // pred_region
      %v96 = vld [vmem:[#allocation2] sm:$0xff]
      %97 = vadd.xlane.f32.xlu0 %v96
      %v98 = vpop.xlane.xlu0 %97
      %v99 = vrot.slane %v98, 4
      %v100 = vadd.f32 %v98, %v99
      %v101 = vrot.slane %v100, 2
      %v102 = vadd.f32 %v100, %v101
      %v103 = vrot.slane %v102, 1
      %v104 = vadd.f32 %v102, %v103
      %s105 = vtos %v104
      %s106 = scalar_lea.smem [#allocation8], 0
      %107 = sst [smem:[%s106]] %s105
    $region25: #{tpu_custom_call.1} parent=1 // pred_fallthru
      _
    // Predicated region
    $region26: #{tpu_custom_call.1} parent=1 // pred_check
      _
    $region27: #{tpu_custom_call.1} parent=1 // pred_check_branch
      %109 = sbr.rel (0) target = $region29
    $region28: #{tpu_custom_call.1} parent=1 // pred_region
      %s111 = ssub.s32 16, 16
      %112 = vsyncadd [#allocation5], %s111
      %115 = dma.smem_to_hbm [#allocation8], 16, %s2, [#allocation5]
    $region29: #{tpu_custom_call.1} parent=1 // pred_fallthru
      _
    // Predicated region
    $region30: #{tpu_custom_call.1} parent=1 // pred_check
      _
    $region31: #{tpu_custom_call.1} parent=1 // pred_check_branch
      %117 = sbr.rel (0) target = $region33
    $region32: #{tpu_custom_call.1} parent=1 // pred_region
      %118 = dma.done [#allocation5], 16
    $region33: #{tpu_custom_call.1} parent=1 // pred_fallthru
      _
    %119 = sfence
    %120 = vsyncpa [#allocation4], 1
    %121 = vsyncpa [#allocation7], 1
    %122 = vsyncpa [#allocation5], 1

</llo_original>
